<compile_context>
chip_gen: v5e
topology: v5e:2x2
jax: 0.10.0
libtpu: 0.0.40
codegen_flags: <defaults>
</compile_context>

<pallas_src>
import functools

import jax
import jax.numpy as jnp
from jax import lax
from jax.experimental import pallas as pl
from jax.experimental.pallas import tpu as pltpu


def _subpixel_weights(w_oihw, compute_dtype):
    """Fold the 2x nearest upsample into the 3x3 conv weights.

    Returns a (4*Cout, 9*Cin) matrix.  Row p = (a*2 + b)*Cout + o holds the effective
    weights of output sub-pixel phase (a, b) against the 9 taps (dh, dw) in {-1,0,1}^2
    of the ORIGINAL-resolution input (zero outside the image); column index is
    ((dh+1)*3 + (dw+1))*Cin + i.
    """
    Cout, Cin, _, _ = w_oihw.shape
    w_hwio = jnp.transpose(w_oihw, (2, 3, 1, 0)).astype(jnp.float32)   # (3,3,Cin,Cout)
    # Phase-dependent collapse of the 3 original kernel taps onto offsets {-1,0,+1}:
    #   even output row/col (phase 0): kh=0 -> -1, kh=1 -> 0, kh=2 -> 0
    #   odd  output row/col (phase 1): kh=0 ->  0, kh=1 -> 0, kh=2 -> +1
    M = jnp.array([[[1., 0., 0.],
                    [0., 1., 1.],
                    [0., 0., 0.]],
                   [[0., 0., 0.],
                    [1., 1., 0.],
                    [0., 0., 1.]]], jnp.float32)        # (phase, tap offset, orig tap)
    w_eff = jnp.einsum('ahk,bwl,klio->abhwoi', M, M, w_hwio,
                       precision=lax.Precision.HIGHEST)  # (2,2,3,3,Cout,Cin), exact sums
    w_big = w_eff.transpose(0, 1, 4, 2, 3, 5).reshape(4 * Cout, 9 * Cin)
    return w_big.astype(compute_dtype)


def _deconv_subpixel_kernel(x_ref, w_ref, o_ref, xbuf_ref, *, width):
    # x_ref   : (1, Cin, H*W)        flattened original-resolution input, one batch elt
    # w_ref   : (4*Cout, 9*Cin)      phase-major effective sub-pixel weights
    # o_ref   : (1, 4*Cout, H*W)     phase-major output, spatial flat on lanes (mult of 128)
    # xbuf_ref: (Cin, H*W + 2*(W+1)) VMEM scratch: flat image with zero halos at both ends
    _, cin, hw = x_ref.shape
    pad = width + 1

    # Zero halos + single contiguous store of the flattened image (no per-row loop).
    # Re-zero every grid step: scratch persists across iterations and v7x megacore may
    # start a core at program_id > 0.
    xbuf_ref[...] = jnp.zeros(xbuf_ref.shape, xbuf_ref.dtype)
    xbuf_ref[:, pad:pad + hw] = x_ref[0]

    # Column-edge masks: reading column c-1 / c+1 wraps across image rows in the flat
    # layout, so kill those lanes.  Row out-of-range taps land in the zero halo and
    # need no mask.  Masks are 0/1 in the compute dtype -> exact VPU multiply.
    col = lax.broadcasted_iota(jnp.int32, (1, hw), 1) % width
    keep_l = (col != 0).astype(xbuf_ref.dtype)            # valid when reading c-1
    keep_r = (col != width - 1).astype(xbuf_ref.dtype)    # valid when reading c+1

    # im2col: each of the 9 taps is a contiguous lane slice of the flat buffer, i.e.
    # just a lane rotation (XLU) — no 2D window re-layouts, no reshapes.
    taps = []
    for dh in (-1, 0, 1):
        for dw in (-1, 0, 1):
            start = pad + dh * width + dw
            t = xbuf_ref[:, start:start + hw]              # (Cin, H*W)
            if dw == -1:
                t = t * keep_l
            elif dw == 1:
                t = t * keep_r
            taps.append(t)
    patch = jnp.concatenate(taps, axis=0)                  # (9*Cin, H*W)

    # Single MXU matmul computes all 4 sub-pixel phases at once (f32 accumulation).
    acc = jnp.dot(w_ref[...], patch, preferred_element_type=jnp.float32)
    o_ref[0] = acc.astype(o_ref.dtype)                     # unmasked, lane-dense store


def deconv_layer(x_nchw, w_oihw, *, compute_dtype=None):
    """Forward of DeConvLayer: interpolate(scale_factor=2, nearest) -> Conv2d(3x3, pad=1)."""
    B, Cin, H, W = x_nchw.shape
    Cout = w_oihw.shape[0]
    out_dtype = x_nchw.dtype
    if compute_dtype is None:
        compute_dtype = x_nchw.dtype
    HW = H * W
    PAD = W + 1

    w_big = _subpixel_weights(w_oihw, compute_dtype)                  # (4*Cout, 9*Cin)
    x_flat = x_nchw.astype(compute_dtype).reshape(B, Cin, HW)         # NCHW row-major flatten

    kernel = functools.partial(_deconv_subpixel_kernel, width=W)

    out_flat = pl.pallas_call(
        kernel,
        out_shape=jax.ShapeDtypeStruct((B, 4 * Cout, HW), out_dtype),
        grid=(B,),
        in_specs=[
            pl.BlockSpec((1, Cin, HW), lambda b: (b, 0, 0)),
            pl.BlockSpec((4 * Cout, 9 * Cin), lambda b: (0, 0)),
        ],
        out_specs=pl.BlockSpec((1, 4 * Cout, HW), lambda b: (b, 0, 0)),
        scratch_shapes=[pltpu.VMEM((Cin, HW + 2 * PAD), compute_dtype)],
        compiler_params=pltpu.CompilerParams(
            dimension_semantics=("parallel",),            # v7x: 2 TCs share the batch
            vmem_limit_bytes=32 * 1024 * 1024),
    )(x_flat, w_big)

    # Depth-to-space: interleave the 4 phases into (2H, 2W).  Single XLA pass over the
    # (small) output; keeping it outside keeps the kernel's stores lane-dense.
    # TODO(synk): fuse this phase interleave into the kernel with lane-strided stores
    #             if/when that reliably beats one extra XLA pass over the output.
    y = out_flat.reshape(B, 2, 2, Cout, H, W)             # (batch, a, b, o, r, c)
    y = y.transpose(0, 3, 4, 1, 5, 2).reshape(B, Cout, 2 * H, 2 * W)
    return y


def reference(x_nchw, w_oihw):
    """Pure-JAX/XLA reference: nearest 2x upsample + conv3x3(pad=1), NCHW/OIHW."""
    x_up = jnp.repeat(jnp.repeat(x_nchw, 2, axis=2), 2, axis=3)
    return lax.conv_general_dilated(
        x_up, w_oihw, window_strides=(1, 1), padding=((1, 1), (1, 1)),
        dimension_numbers=('NCHW', 'OIHW', 'NCHW'))


if __name__ == "__main__":
    # Small shapes implied by the module: batch=2, input_nc=4, output_nc=8, 16x16.
    B, Cin, Cout, H, W = 2, 4, 8, 16, 16

    key = jax.random.PRNGKey(0)
    kx, kw = jax.random.split(key)
    x = jax.random.normal(kx, (B, Cin, H, W), dtype=jnp.float32)
    # Deterministic synthetic Conv2d weights, PyTorch shape (out, in, 3, 3), no bias.
    w_oihw = jax.random.normal(kw, (Cout, Cin, 3, 3), dtype=jnp.float32) * 0.1

    out = jax.block_until_ready(deconv_layer(x, w_oihw))
    ref = jax.block_until_ready(reference(x, w_oihw))
    assert out.shape == (B, Cout, 2 * H, 2 * W), out.shape
    assert jnp.allclose(out, ref, atol=1e-4, rtol=1e-4), (
        "f32 mismatch vs reference, max |err| = %e" % float(jnp.max(jnp.abs(out - ref))))

    # Optional bf16 MXU path (f32 accumulation); loose tolerance for bf16 rounding.
    out_bf = jax.block_until_ready(deconv_layer(x, w_oihw, compute_dtype=jnp.bfloat16))
    assert out_bf.shape == (B, Cout, 2 * H, 2 * W), out_bf.shape
    assert float(jnp.max(jnp.abs(out_bf - ref))) < 1.5e-1, (
        "bf16 mismatch vs reference, max |err| = %e" % float(jnp.max(jnp.abs(out_bf - ref))))

    print("KERNEL_OK")
</pallas_src>

<mosaic_0001>
module attributes {stable_mosaic.version = 11 : i64} {
  func.func @_deconv_subpixel_kernel(%arg0: i32, %arg1: memref<1x4x256xf32, #tpu.memory_space<vmem>>, %arg2: memref<32x36xf32, #tpu.memory_space<vmem>>, %arg3: memref<1x32x256xf32, #tpu.memory_space<vmem>>, %arg4: memref<4x290xf32, #tpu.memory_space<vmem>>) attributes {dimension_semantics = [#tpu.dimension_semantics<parallel>], iteration_bounds = array<i64: 2>, scalar_prefetch = 0 : i64, scratch_operands = 1 : i64, tpu.core_type = #tpu.core_type<tc>, window_params = [{transform_indices = @transform_0, window_bounds = array<i64: 1, 4, 256>}, {pipeline_mode = #tpu.pipeline_mode<synchronous>, transform_indices = @transform_1, window_bounds = array<i64: 32, 36>}, {transform_indices = @transform_2, window_bounds = array<i64: 1, 32, 256>}]} {
    %cst = arith.constant 0.000000e+00 : f32
    %0 = vector.broadcast %cst : f32 to vector<4x290xf32>
    %c0 = arith.constant 0 : index
    %c0_0 = arith.constant 0 : index
    %1 = vector.load %arg4[%c0, %c0_0] : memref<4x290xf32, #tpu.memory_space<vmem>>, vector<4x290xf32>
    tpu.vector_store %arg4[%c0, %c0_0], %0 {strides = array<i32>} : memref<4x290xf32, #tpu.memory_space<vmem>>, vector<4x290xf32>,
    %c0_1 = arith.constant 0 : index
    %c0_2 = arith.constant 0 : index
    %c0_3 = arith.constant 0 : index
    %2 = vector.load %arg1[%c0_1, %c0_2, %c0_3] : memref<1x4x256xf32, #tpu.memory_space<vmem>>, vector<1x4x256xf32>
    %3 = vector.shape_cast %2 : vector<1x4x256xf32> to vector<4x256xf32>
    %c0_4 = arith.constant 0 : index
    %c17 = arith.constant 17 : index
    %4 = vector.load %arg4[%c0_4, %c17] : memref<4x290xf32, #tpu.memory_space<vmem>>, vector<4x256xf32>
    tpu.vector_store %arg4[%c0_4, %c17], %3 {strides = array<i32>} : memref<4x290xf32, #tpu.memory_space<vmem>>, vector<4x256xf32>,
    %5 = tpu.iota {dimensions = array<i32: 1>} : vector<1x256xi32>
    %c16_i32 = arith.constant 16 : i32
    %c0_i32 = arith.constant 0 : i32
    %6 = arith.cmpi eq, %c16_i32, %c0_i32 : i32
    %c1_i32 = arith.constant 1 : i32
    %7 = arith.select %6, %c1_i32, %c16_i32 : i32
    %8 = vector.broadcast %7 : i32 to vector<1x256xi32>
    %9 = arith.remsi %5, %8 : vector<1x256xi32>
    %c0_i32_5 = arith.constant 0 : i32
    %10 = vector.broadcast %c0_i32_5 : i32 to vector<1x256xi32>
    %11 = arith.cmpi ne, %9, %10 : vector<1x256xi32>
    %c0_i32_6 = arith.constant 0 : i32
    %12 = vector.broadcast %c0_i32_6 : i32 to vector<1x256xi32>
    %13 = arith.cmpi slt, %9, %12 : vector<1x256xi32>
    %c0_i32_7 = arith.constant 0 : i32
    %14 = arith.cmpi slt, %7, %c0_i32_7 : i32
    %15 = vector.broadcast %14 : i1 to vector<1x256xi1>
    %16 = vector.broadcast %15 : vector<1x256xi1> to vector<1x256xi1>
    %17 = arith.xori %13, %16 : vector<1x256xi1>
    %18 = arith.andi %17, %11 : vector<1x256xi1>
    %19 = vector.broadcast %7 : i32 to vector<1x256xi32>
    %20 = arith.addi %9, %19 : vector<1x256xi32>
    %21 = arith.select %18, %20, %9 : vector<1x256xi1>, vector<1x256xi32>
    %c0_i32_8 = arith.constant 0 : i32
    %22 = vector.broadcast %c0_i32_8 : i32 to vector<1x256xi32>
    %23 = arith.cmpi ne, %21, %22 : vector<1x256xi32>
    %24 = arith.extui %23 : vector<1x256xi1> to vector<1x256xi32>
    %25 = arith.sitofp %24 : vector<1x256xi32> to vector<1x256xf32>
    %c15_i32 = arith.constant 15 : i32
    %26 = vector.broadcast %c15_i32 : i32 to vector<1x256xi32>
    %27 = arith.cmpi ne, %21, %26 : vector<1x256xi32>
    %28 = arith.extui %27 : vector<1x256xi1> to vector<1x256xi32>
    %29 = arith.sitofp %28 : vector<1x256xi32> to vector<1x256xf32>
    %c0_9 = arith.constant 0 : index
    %c0_10 = arith.constant 0 : index
    %30 = vector.load %arg4[%c0_9, %c0_10] : memref<4x290xf32, #tpu.memory_space<vmem>>, vector<4x256xf32>
    %31 = vector.broadcast %25 : vector<1x256xf32> to vector<4x256xf32>
    %32 = arith.mulf %30, %31 : vector<4x256xf32>
    %c0_11 = arith.constant 0 : index
    %c1 = arith.constant 1 : index
    %33 = vector.load %arg4[%c0_11, %c1] : memref<4x290xf32, #tpu.memory_space<vmem>>, vector<4x256xf32>
    %c0_12 = arith.constant 0 : index
    %c2 = arith.constant 2 : index
    %34 = vector.load %arg4[%c0_12, %c2] : memref<4x290xf32, #tpu.memory_space<vmem>>, vector<4x256xf32>
    %35 = vector.broadcast %29 : vector<1x256xf32> to vector<4x256xf32>
    %36 = arith.mulf %34, %35 : vector<4x256xf32>
    %c0_13 = arith.constant 0 : index
    %c16 = arith.constant 16 : index
    %37 = vector.load %arg4[%c0_13, %c16] : memref<4x290xf32, #tpu.memory_space<vmem>>, vector<4x256xf32>
    %38 = vector.broadcast %25 : vector<1x256xf32> to vector<4x256xf32>
    %39 = arith.mulf %37, %38 : vector<4x256xf32>
    %c0_14 = arith.constant 0 : index
    %c17_15 = arith.constant 17 : index
    %40 = vector.load %arg4[%c0_14, %c17_15] : memref<4x290xf32, #tpu.memory_space<vmem>>, vector<4x256xf32>
    %c0_16 = arith.constant 0 : index
    %c18 = arith.constant 18 : index
    %41 = vector.load %arg4[%c0_16, %c18] : memref<4x290xf32, #tpu.memory_space<vmem>>, vector<4x256xf32>
    %42 = vector.broadcast %29 : vector<1x256xf32> to vector<4x256xf32>
    %43 = arith.mulf %41, %42 : vector<4x256xf32>
    %c0_17 = arith.constant 0 : index
    %c32 = arith.constant 32 : index
    %44 = vector.load %arg4[%c0_17, %c32] : memref<4x290xf32, #tpu.memory_space<vmem>>, vector<4x256xf32>
    %45 = vector.broadcast %25 : vector<1x256xf32> to vector<4x256xf32>
    %46 = arith.mulf %44, %45 : vector<4x256xf32>
    %c0_18 = arith.constant 0 : index
    %c33 = arith.constant 33 : index
    %47 = vector.load %arg4[%c0_18, %c33] : memref<4x290xf32, #tpu.memory_space<vmem>>, vector<4x256xf32>
    %c0_19 = arith.constant 0 : index
    %c34 = arith.constant 34 : index
    %48 = vector.load %arg4[%c0_19, %c34] : memref<4x290xf32, #tpu.memory_space<vmem>>, vector<4x256xf32>
    %49 = vector.broadcast %29 : vector<1x256xf32> to vector<4x256xf32>
    %50 = arith.mulf %48, %49 : vector<4x256xf32>
    %51 = tpu.concatenate %32, %33, %36, %39, %40, %43, %46, %47, %50 in 0 : vector<4x256xf32>, vector<4x256xf32>, vector<4x256xf32>, vector<4x256xf32>, vector<4x256xf32>, vector<4x256xf32>, vector<4x256xf32>, vector<4x256xf32>, vector<4x256xf32> -> vector<36x256xf32>
    %c0_20 = arith.constant 0 : index
    %c0_21 = arith.constant 0 : index
    %52 = vector.load %arg2[%c0_20, %c0_21] : memref<32x36xf32, #tpu.memory_space<vmem>>, vector<32x36xf32>
    %cst_22 = arith.constant dense<0.000000e+00> : vector<32x256xf32>
    %53 = tpu.matmul %52, %51, %cst_22 {dimension_numbers = #tpu.dot_dimension_numbers<[1], [0], [0], [1], [0, 0, 1, 1], [], []>} : vector<32x36xf32>, vector<36x256xf32>, vector<32x256xf32> -> vector<32x256xf32>
    %c0_23 = arith.constant 0 : index
    %c0_24 = arith.constant 0 : index
    %c0_25 = arith.constant 0 : index
    %54 = vector.load %arg3[%c0_23, %c0_24, %c0_25] : memref<1x32x256xf32, #tpu.memory_space<vmem>>, vector<1x32x256xf32>
    %55 = vector.shape_cast %54 : vector<1x32x256xf32> to vector<32x256xf32>
    %56 = vector.shape_cast %53 : vector<32x256xf32> to vector<1x32x256xf32>
    tpu.vector_store %arg3[%c0_23, %c0_24, %c0_25], %56 {strides = array<i32>} : memref<1x32x256xf32, #tpu.memory_space<vmem>>, vector<1x32x256xf32>,
    return
  }
  func.func @transform_0(%arg0: i32) -> (i32, i32, i32) {
    %c0_i32 = arith.constant 0 : i32
    %c0_i32_0 = arith.constant 0 : i32
    %c0_i32_1 = arith.constant 0 : i32
    return %arg0, %c0_i32, %c0_i32_0 : i32, i32, i32
  }
  func.func @transform_1(%arg0: i32) -> (i32, i32) {
    %c0_i32 = arith.constant 0 : i32
    %c0_i32_0 = arith.constant 0 : i32
    %c0_i32_1 = arith.constant 0 : i32
    return %c0_i32, %c0_i32_0 : i32, i32
  }
  func.func @transform_2(%arg0: i32) -> (i32, i32, i32) {
    %c0_i32 = arith.constant 0 : i32
    %c0_i32_0 = arith.constant 0 : i32
    %c0_i32_1 = arith.constant 0 : i32
    return %arg0, %c0_i32, %c0_i32_0 : i32, i32, i32
  }
}

</mosaic_0001>

<llo_original>
// kernel: tpu_custom_call.1
$region0: #{tpu_custom_call.1}
  #allocation0 [shape = 'u32[]', space=smem, size = 0x4, offset = 0x4, fixed_abs, tag = 'smem constant byte address 0x4 - core index']
  #allocation1 [shape = 'u32[72,128]{1,0:T(1,128)}', space=vmem, size = 0x9000, scoped, tag = 'internal scratch']
  #allocation2 [shape = 'f32[4,290]{1,0:T(4,128)}', space=vmem, size = 0x1800, scoped, tag = 'scratch operand']
  %s0 = inlined_call_operand.hbm [shape: f32[2,4,256], index: 0, kind: input, shape index: {}]
  %s1 = inlined_call_operand.hbm [shape: f32[32,36], index: 1, kind: input, shape index: {}]
  %s2 = inlined_call_operand.hbm [shape: f32[2,32,256], index: 2, kind: output, shape index: {}]
  %s3 = sld [smem:[#allocation0]]
  $region49: #{tpu_custom_call.1} parent=0
    _
  %s5 = ssub.s32 1, %s3
  %s6 = scalar_select 0, %s5, %s3
  $region1: #{tpu_custom_call.1} parent=0
    #allocation3 [shape = 'u8[8192]{0}', space=vmem, size = 0x2000, scoped, tag = 'input window, operand 0']
    #allocation4 [shape = 's32[2]{0}', space=sflag, size = 0x8, scoped, tag = 'scoped memory for tpu_custom_call.1']
    #allocation5 [shape = 's32[2]{0}', space=sflag, size = 0x8, scoped, tag = 'scoped memory for tpu_custom_call.1']
    #allocation6 [shape = 'u8[16384]{0}', space=vmem, size = 0x4000, scoped, tag = 'input window, operand 1, single buffered']
    #allocation7 [shape = 's32[1]{0}', space=sflag, size = 0x4, scoped, tag = 'scoped memory for tpu_custom_call.1']
    #allocation8 [shape = 'u8[65536]{0}', space=vmem, size = 0x10000, scoped, tag = 'output window, operand 0']
    %7 = vsyncpa [#allocation4], 0
    %s8 = scalar_lea.sflag [#allocation4], 1
    %9 = vsyncpa %s8, 0
    %10 = vsyncpa [#allocation7], 0
    %11 = vsyncpa [#allocation5], 0
    %s12 = scalar_lea.sflag [#allocation5], 1
    %13 = vsyncpa %s12, 0
    loop: start=0, step=1, limit=4
    $region2: #{tpu_custom_call.1} parent=1 // loop_pre_header
      _
    $region3: #{tpu_custom_call.1} parent=1 // loop_header
      %s15 = sphi 0, %s19
      %p16 = scmp.ge.s32.totalorder %s15, 4
      %s25 = sphi 0, %s27
      %s28 = sphi 0, %s25
      %s29 = sphi 0, %s28
      %s45 = sphi 0, %s29
      %s49 = sphi 0, %s49
      %s51 = sphi 0, %s49
      %s52 = sphi 0, %s51
      %s66 = sphi 0, %s52
      %s72 = sphi 0, %s74
      %s75 = sphi 0, %s72
      %s76 = sphi 0, %s75
      %s92 = sphi 0, %s76
    $region4: #{tpu_custom_call.1} parent=1 // loop_header_branch
      %18 = sbr.rel (%p16) target = $region8
    $region5: #{tpu_custom_call.1} parent=1 // loop_body
      %s20 = ssub.s32 %s15, 1
      %s21 = ssub.s32 %s15, 2
      %s22 = sadd.s32 %s15, 1
      %s23 = ssub.s32 %s15, %s22
      %p24 = scmp.eq.s32.totalorder %s23, 0
      %s26 = sadd.s32 %s25, 1
      %s27 = scalar_select %p24, %s25, %s26
      %p30 = pneg %p24
      %p31 = scmp.eq.s32.totalorder %s15, 1
      %p32 = por %p30, %p31
      %p33 = scmp.ne.s32.totalorder %s25, %s28
      %p34 = scmp.eq.s32.totalorder %s15, 0
      %p35 = por %p33, %p34
      %p36 = scmp.ne.s32.totalorder %s25, %s28
      %p37 = scmp.eq.s32.totalorder %s20, 1
      %p38 = por %p36, %p37
      %p39 = scmp.ne.s32.totalorder %s28, %s29
      %p40 = scmp.eq.s32.totalorder %s20, 0
      %p41 = por %p39, %p40
      %p42 = scmp.ne.s32.totalorder %s28, %s29
      %p43 = scmp.eq.s32.totalorder %s21, 1
      %p44 = por %p42, %p43
      %p46 = scmp.ne.s32.totalorder %s29, %s45
      %p47 = scmp.eq.s32.totalorder %s21, 0
      %p48 = por %p46, %p47
      %s50 = sadd.s32 %s49, 1
      %p53 = scmp.eq.s32.totalorder %s15, 1
      %p54 = scmp.ne.s32.totalorder %s49, %s51
      %p55 = scmp.eq.s32.totalorder %s15, 0
      %p56 = por %p54, %p55
      %p57 = scmp.ne.s32.totalorder %s49, %s51
      %p58 = scmp.eq.s32.totalorder %s20, 1
      %p59 = por %p57, %p58
      %p60 = scmp.ne.s32.totalorder %s51, %s52
      %p61 = scmp.eq.s32.totalorder %s20, 0
      %p62 = por %p60, %p61
      %p63 = scmp.ne.s32.totalorder %s51, %s52
      %p64 = scmp.eq.s32.totalorder %s21, 1
      %p65 = por %p63, %p64
      %p67 = scmp.ne.s32.totalorder %s52, %s66
      %p68 = scmp.eq.s32.totalorder %s21, 0
      %p69 = por %p67, %p68
      %s70 = ssub.s32 %s15, %s22
      %p71 = scmp.eq.s32.totalorder %s70, 0
      %s73 = sadd.s32 %s72, 1
      %s74 = scalar_select %p71, %s72, %s73
      %p77 = pneg %p71
      %p78 = scmp.eq.s32.totalorder %s15, 1
      %p79 = por %p77, %p78
      %p80 = scmp.ne.s32.totalorder %s72, %s75
      %p81 = scmp.eq.s32.totalorder %s15, 0
      %p82 = por %p80, %p81
      %p83 = scmp.ne.s32.totalorder %s72, %s75
      %p84 = scmp.eq.s32.totalorder %s20, 1
      %p85 = por %p83, %p84
      %p86 = scmp.ne.s32.totalorder %s75, %s76
      %p87 = scmp.eq.s32.totalorder %s20, 0
      %p88 = por %p86, %p87
      %p89 = scmp.ne.s32.totalorder %s75, %s76
      %p90 = scmp.eq.s32.totalorder %s21, 1
      %p91 = por %p89, %p90
      %p93 = scmp.ne.s32.totalorder %s76, %s92
      %p94 = scmp.eq.s32.totalorder %s21, 0
      %p95 = por %p93, %p94
      %p96 = scmp.le.s32.totalorder 1, %s15
      %p97 = scmp.lt.s32.totalorder %s15, 3
      %p98 = pnand %p96, %p97
      %p99 = pneg %p98
      // Predicated region
      $region9: #{tpu_custom_call.1} parent=5 // pred_check
        _
      $region10: #{tpu_custom_call.1} parent=5 // pred_check_branch
        %101 = sbr.rel (%p98) target = $region12
      $region11: #{tpu_custom_call.1} parent=5 // pred_region
        %s102 = ssub.s32 %s15, 1
        // Predicated region
        $region13: #{tpu_custom_call.1} parent=11 // pred_check
          %p103 = pneg %p62
        $region14: #{tpu_custom_call.1} parent=11 // pred_check_branch
          %105 = sbr.rel (%p103) target = $region16
        $region15: #{tpu_custom_call.1} parent=11 // pred_region
          %107 = vsyncadd [#allocation7], 0
          %s108 = sshll.u32 %s1, 4
          %s109 = int_to_ptr.hbm [resolvable:$true] %s108
          %s110 = sshll.u32 [#allocation6], 4
          %s111 = int_to_ptr.vmem [resolvable:$true] %s110
          %116 = dma.hbm_to_vmem [thread:$0]  %s109, 512, %s111, [#allocation7], 128, 128, 8
        $region16: #{tpu_custom_call.1} parent=11 // pred_fallthru
          _
      $region12: #{tpu_custom_call.1} parent=5 // pred_fallthru
        _
      %p117 = scmp.lt.s32.totalorder %s15, 2
      // Predicated region
      $region17: #{tpu_custom_call.1} parent=5 // pred_check
        %p118 = pneg %p117
      $region18: #{tpu_custom_call.1} parent=5 // pred_check_branch
        %120 = sbr.rel (%p118) target = $region20
      $region19: #{tpu_custom_call.1} parent=5 // pred_region
        // Predicated region
        $region21: #{tpu_custom_call.1} parent=19 // pred_check
          %p121 = pneg %p35
        $region22: #{tpu_custom_call.1} parent=19 // pred_check_branch
          %123 = sbr.rel (%p121) target = $region24
        $region23: #{tpu_custom_call.1} parent=19 // pred_region
          %s124 = sand.u32 %s25, 1
          %s125 = scalar_lea.sflag [#allocation4], %s124
          %s126 = sand.u32 %s25, 1
          %s127 = smul.addr %s126, 8
          %s128 = scalar_lea.vmem [#allocation3], %s127
          %130 = vsyncadd %s125, 0
          %s131 = smul.addr %s15, 2
          %s132 = smul.addr %s131, 4
          %s133 = scalar_lea.hbm %s0, %s132
          %s135 = sshll.u32 %s133, 4
          %s136 = int_to_ptr.hbm [resolvable:$true] %s135
          %s137 = sshll.u32 %s128, 4
          %s138 = int_to_ptr.vmem [resolvable:$true] %s137
          %140 = dma.hbm_to_vmem [thread:$0]  %s136, 128, %s138, %s125
        $region24: #{tpu_custom_call.1} parent=19 // pred_fallthru
          _
      $region20: #{tpu_custom_call.1} parent=5 // pred_fallthru
        _
      %p141 = scmp.le.s32.totalorder 1, %s15
      %p142 = scmp.lt.s32.totalorder %s15, 3
      %p143 = pnand %p141, %p142
      %p144 = pneg %p143
      // Predicated region
      $region25: #{tpu_custom_call.1} parent=5 // pred_check
        _
      $region26: #{tpu_custom_call.1} parent=5 // pred_check_branch
        %146 = sbr.rel (%p143) target = $region28
      $region27: #{tpu_custom_call.1} parent=5 // pred_region
        %s147 = ssub.s32 %s15, 1
        %s148 = sand.u32 %s28, 1
        %s149 = scalar_lea.sflag [#allocation4], %s148
        %s150 = sand.u32 %s28, 1
        %s151 = smul.addr %s150, 8
        %s152 = scalar_lea.vmem [#allocation3], %s151
        // Predicated region
        $region29: #{tpu_custom_call.1} parent=27 // pred_check
          %p153 = pneg %p41
        $region30: #{tpu_custom_call.1} parent=27 // pred_check_branch
          %155 = sbr.rel (%p153) target = $region32
        $region31: #{tpu_custom_call.1} parent=27 // pred_region
          %157 = dma.done %s149, 128
        $region32: #{tpu_custom_call.1} parent=27 // pred_fallthru
          _
        // Predicated region
        $region33: #{tpu_custom_call.1} parent=27 // pred_check
          %p158 = pneg %p62
        $region34: #{tpu_custom_call.1} parent=27 // pred_check_branch
          %160 = sbr.rel (%p158) target = $region36
        $region35: #{tpu_custom_call.1} parent=27 // pred_region
          %162 = dma.done [#allocation7], 512
        $region36: #{tpu_custom_call.1} parent=27 // pred_fallthru
          _
        %s163 = sand.u32 %s28, 1
        %s164 = scalar_lea.sflag [#allocation4], %s163
        %s165 = sand.u32 %s28, 1
        %s166 = smul.addr %s165, 8
        %s167 = scalar_lea.vmem [#allocation3], %s166
        %p168 = pneg %p41
        %p169 = pneg %p38
        %p170 = pneg %p62
        %p171 = pneg %p59
        %p172 = pneg %p88
        %p173 = pneg %p85
        %s174 = sand.u32 %s75, 1
        %s175 = scalar_lea.sflag [#allocation5], %s174
        %s176 = sand.u32 %s75, 1
        %s177 = smul.addr %s176, 64
        %s178 = scalar_lea.vmem [#allocation8], %s177
        %179 = vst [vmem:[#allocation2] sm:$0xff] 0.0
        %vm180 = vcmask 273408
        %181 = vst.msk [vmem:[#allocation2 + $0x8] sm:$0xf] %vm180, 0.0
        %v182 = vld [vmem:[%s152] sm:$0xff]
        %184 = vrot.lane.b32.xlu0 %v182, 17
        %v185 = vpop.permute.xlu0 %184
        %v186 = vrot.slane %v185, 4
        %vm187 = vcmask 138240
        %v188 = vsel %vm187, %v186, %v185
        %vm191 = vcmask 1043592
        %vm192 = vcmask 1047556
        %vm193 = vmor %vm192, %vm191
        %194 = vst.msk [vmem:[#allocation2] sm:$0xff] %vm193, %v188
        %vm195 = vcmask 134144
        %196 = vst.msk [vmem:[#allocation2 + $0x8] sm:$0xf] %vm195, %v186
        %v197 = vlaneseq
        %v198 = vand.u32 %v197, 127
        %v199 = vadd.s32 %v198, 128
        %vm200 = vcmp.lt.s32.totalorder %v198, 0
        %v201 = vsub.s32 0, %v198
        %v202 = vsel %vm200, %v201, %v198
        %v203 = vshrl.u32 %v202, 4
        %v204 = vand.u32 %v202, 15
        %v205 = vsub.s32 0, %v204
        %v206 = vsel %vm200, %v205, %v204
        %vm207 = vcmp.lt.s32.totalorder %v199, 0
        %v208 = vsub.s32 0, %v199
        %v209 = vsel %vm207, %v208, %v199
        %v210 = vshrl.u32 %v209, 4
        %v211 = vand.u32 %v209, 15
        %v212 = vsub.s32 0, %v211
        %v213 = vsel %vm207, %v212, %v211
        %vm214 = vcmp.ne.s32.totalorder %v206, 0
        %vm215 = vcmp.ne.s32.totalorder %v213, 0
        %vm216 = vcmp.lt.s32.totalorder %v206, 0
        %vm217 = vcmp.lt.s32.totalorder %v213, 0
        %vm218 = vmand %vm216, %vm214
        %vm219 = vmand %vm217, %vm215
        %v220 = vadd.s32 %v206, 16
        %v221 = vadd.s32 %v213, 16
        %v222 = vsel %vm218, %v220, %v206
        %v223 = vsel %vm219, %v221, %v213
        %vm224 = vcmp.ne.s32.totalorder %v222, 0
        %vm225 = vcmp.ne.s32.totalorder %v223, 0
        %v226 = vsel %vm224, 1, 0
        %v227 = vsel %vm225, 1, 0
        %v228 = vcvt.s32.f32 %v226
        %v229 = vcvt.s32.f32 %v227
        %vm230 = vcmp.ne.s32.totalorder %v222, 15
        %vm231 = vcmp.ne.s32.totalorder %v223, 15
        %v232 = vsel %vm230, 1, 0
        %v233 = vsel %vm231, 1, 0
        %v234 = vcvt.s32.f32 %v232
        %v235 = vcvt.s32.f32 %v233
        %v236 = vld [vmem:[#allocation2] sm:$0xff]
        %v239 = vrot.slane %v229, 4
        %vm240 = vcmask 1043456
        %v241 = vsel %vm240, %v228, %v239
        %v243 = vmul.f32 %v236, %v241
        %v244 = vld [vmem:[#allocation2 + $0x8] sm:$0xf]
        %v247 = vrot.slane %v235, 4
        %v248 = vsel %vm240, %v234, %v247
        %249 = vrot.lane.b32.xlu0 %v248, 2
        %v250 = vpop.permute.xlu0 %249
        %v251 = vrot.slane %v250, 4
        %vm252 = vcmask 15360
        %v253 = vsel %vm252, %v251, %v250
        %v256 = vmul.f32 %v236, %v253
        %v257 = vmul.f32 %v244, %v251
        %258 = vrot.lane.b32.xlu0 %v241, 16
        %v259 = vpop.permute.xlu0 %258
        %v260 = vrot.slane %v259, 4
        %vm261 = vcmask 130048
        %v262 = vsel %vm261, %v260, %v259
        %v265 = vmul.f32 %v236, %v262
        %v266 = vmul.f32 %v244, %v260
        %267 = vrot.lane.b32.xlu0 %v248, 18
        %v268 = vpop.permute.xlu0 %267
        %v269 = vrot.slane %v268, 4
        %vm270 = vcmask 146432
        %v271 = vsel %vm270, %v269, %v268
        %v274 = vmul.f32 %v236, %v271
        %v275 = vmul.f32 %v244, %v269
        %276 = vrot.lane.b32.xlu0 %v241, 32
        %v277 = vpop.permute.xlu0 %276
        %v278 = vrot.slane %v277, 4
        %vm279 = vcmask 261120
        %v280 = vsel %vm279, %v278, %v277
        %v283 = vmul.f32 %v236, %v280
        %v284 = vmul.f32 %v244, %v278
        %285 = vrot.lane.b32.xlu0 %v248, 34
        %v286 = vpop.permute.xlu0 %285
        %v287 = vrot.slane %v286, 4
        %vm288 = vcmask 277504
        %v289 = vsel %vm288, %v287, %v286
        %v292 = vmul.f32 %v236, %v289
        %v293 = vmul.f32 %v244, %v287
        %295 = vst [vmem:[#allocation1] ss:$2 sm:$0xff] %v243
        %v296 = vld.sshfl [vmem:[#allocation1] sm:$0xff pattern:$0x75316420]
        %v297 = vld.sshfl [vmem:[#allocation1 + $0x8] sm:$0xff pattern:$0x75316420]
        %s302 = scalar_lea.vmem [#allocation1], 1
        %303 = vst [vmem:[%s302] ss:$2 sm:$0xff] %v236
        %s304 = scalar_lea.vmem [#allocation1], 17
        %305 = vst [vmem:[%s304] ss:$2 sm:$0xff] %v244
        %v306 = vld.sshfl [vmem:[#allocation1] sm:$0xff pattern:$0x75316420]
        %v307 = vld.sshfl [vmem:[#allocation1 + $0x8] sm:$0xff pattern:$0x75316420]
        %v308 = vld.sshfl [vmem:[#allocation1 + $0x10] sm:$0xff pattern:$0x75316420]
        %309 = vrot.lane.b32.xlu0 %v306, 127
        %v310 = vpop.permute.xlu0 %309
        %311 = vrot.lane.b32.xlu0 %v307, 127
        %v312 = vpop.permute.xlu0 %311
        %313 = vrot.lane.b32.xlu0 %v308, 127
        %v314 = vpop.permute.xlu0 %313
        %vm315 = vcmask 1039360
        %v316 = vsel %vm315, %v310, %v312
        %v317 = vsel %vm315, %v312, %v314
        %322 = vst [vmem:[#allocation1] ss:$2 sm:$0xff] %v256
        %s323 = scalar_lea.vmem [#allocation1], 16
        %324 = vst [vmem:[%s323] ss:$2 sm:$0xff] %v257
        %v325 = vld.sshfl [vmem:[#allocation1] sm:$0xff pattern:$0x75316420]
        %v326 = vld.sshfl [vmem:[#allocation1 + $0x8] sm:$0xff pattern:$0x75316420]
        %v327 = vld.sshfl [vmem:[#allocation1 + $0x10] sm:$0xff pattern:$0x75316420]
        %328 = vrot.lane.b32.xlu0 %v325, 126
        %v329 = vpop.permute.xlu0 %328
        %330 = vrot.lane.b32.xlu0 %v326, 126
        %v331 = vpop.permute.xlu0 %330
        %332 = vrot.lane.b32.xlu0 %v327, 126
        %v333 = vpop.permute.xlu0 %332
        %vm334 = vcmask 1031168
        %v335 = vsel %vm334, %v329, %v331
        %v336 = vsel %vm334, %v331, %v333
        %s341 = scalar_lea.vmem [#allocation1], 1
        %342 = vst [vmem:[%s341] ss:$2 sm:$0xff] %v265
        %s343 = scalar_lea.vmem [#allocation1], 17
        %344 = vst [vmem:[%s343] ss:$2 sm:$0xff] %v266
        %v345 = vld.sshfl [vmem:[#allocation1] sm:$0xff pattern:$0x75316420]
        %v346 = vld.sshfl [vmem:[#allocation1 + $0x8] sm:$0xff pattern:$0x75316420]
        %v347 = vld.sshfl [vmem:[#allocation1 + $0x10] sm:$0xff pattern:$0x75316420]
        %348 = vrot.lane.b32.xlu0 %v345, 112
        %v349 = vpop.permute.xlu0 %348
        %350 = vrot.lane.b32.xlu0 %v346, 112
        %v351 = vpop.permute.xlu0 %350
        %352 = vrot.lane.b32.xlu0 %v347, 112
        %v353 = vpop.permute.xlu0 %352
        %vm354 = vcmask 916480
        %v355 = vsel %vm354, %v349, %v351
        %v356 = vsel %vm354, %v351, %v353
        %359 = vst [vmem:[#allocation1] ss:$2 sm:$0xff] %v236
        %s360 = scalar_lea.vmem [#allocation1], 16
        %361 = vst [vmem:[%s360] ss:$2 sm:$0xff] %v244
        %v362 = vld.sshfl [vmem:[#allocation1] sm:$0xff pattern:$0x75316420]
        %v363 = vld.sshfl [vmem:[#allocation1 + $0x8] sm:$0xff pattern:$0x75316420]
        %v364 = vld.sshfl [vmem:[#allocation1 + $0x10] sm:$0xff pattern:$0x75316420]
        %365 = vrot.lane.b32.xlu0 %v362, 111
        %v366 = vpop.permute.xlu0 %365
        %367 = vrot.lane.b32.xlu0 %v363, 111
        %v368 = vpop.permute.xlu0 %367
        %369 = vrot.lane.b32.xlu0 %v364, 111
        %v370 = vpop.permute.xlu0 %369
        %vm371 = vcmask 908288
        %v372 = vsel %vm371, %v366, %v368
        %v373 = vsel %vm371, %v368, %v370
        %s378 = scalar_lea.vmem [#allocation1], 1
        %379 = vst [vmem:[%s378] ss:$2 sm:$0xff] %v274
        %s380 = scalar_lea.vmem [#allocation1], 17
        %381 = vst [vmem:[%s380] ss:$2 sm:$0xff] %v275
        %v382 = vld.sshfl [vmem:[#allocation1] sm:$0xff pattern:$0x75316420]
        %v383 = vld.sshfl [vmem:[#allocation1 + $0x8] sm:$0xff pattern:$0x75316420]
        %v384 = vld.sshfl [vmem:[#allocation1 + $0x10] sm:$0xff pattern:$0x75316420]
        %385 = vrot.lane.b32.xlu0 %v382, 110
        %v386 = vpop.permute.xlu0 %385
        %387 = vrot.lane.b32.xlu0 %v383, 110
        %v388 = vpop.permute.xlu0 %387
        %389 = vrot.lane.b32.xlu0 %v384, 110
        %v390 = vpop.permute.xlu0 %389
        %vm391 = vcmask 900096
        %v392 = vsel %vm391, %v386, %v388
        %v393 = vsel %vm391, %v388, %v390
        %398 = vst [vmem:[#allocation1] ss:$2 sm:$0xff] %v283
        %s399 = scalar_lea.vmem [#allocation1], 16
        %400 = vst [vmem:[%s399] ss:$2 sm:$0xff] %v284
        %v401 = vld.sshfl [vmem:[#allocation1] sm:$0xff pattern:$0x75316420]
        %v402 = vld.sshfl [vmem:[#allocation1 + $0x8] sm:$0xff pattern:$0x75316420]
        %v403 = vld.sshfl [vmem:[#allocation1 + $0x10] sm:$0xff pattern:$0x75316420]
        %404 = vrot.lane.b32.xlu0 %v401, 96
        %v405 = vpop.permute.xlu0 %404
        %406 = vrot.lane.b32.xlu0 %v402, 96
        %v407 = vpop.permute.xlu0 %406
        %408 = vrot.lane.b32.xlu0 %v403, 96
        %v409 = vpop.permute.xlu0 %408
        %vm410 = vcmask 785408
        %v411 = vsel %vm410, %v405, %v407
        %v412 = vsel %vm410, %v407, %v409
        %s415 = scalar_lea.vmem [#allocation1], 1
        %416 = vst [vmem:[%s415] ss:$2 sm:$0xff] %v236
        %s417 = scalar_lea.vmem [#allocation1], 17
        %418 = vst [vmem:[%s417] ss:$2 sm:$0xff] %v244
        %v419 = vld.sshfl [vmem:[#allocation1] sm:$0xff pattern:$0x75316420]
        %v420 = vld.sshfl [vmem:[#allocation1 + $0x8] sm:$0xff pattern:$0x75316420]
        %v421 = vld.sshfl [vmem:[#allocation1 + $0x10] sm:$0xff pattern:$0x75316420]
        %422 = vrot.lane.b32.xlu0 %v419, 95
        %v423 = vpop.permute.xlu0 %422
        %424 = vrot.lane.b32.xlu0 %v420, 95
        %v425 = vpop.permute.xlu0 %424
        %426 = vrot.lane.b32.xlu0 %v421, 95
        %v427 = vpop.permute.xlu0 %426
        %vm428 = vcmask 777216
        %v429 = vsel %vm428, %v423, %v425
        %v430 = vsel %vm428, %v425, %v427
        %435 = vst [vmem:[#allocation1] ss:$2 sm:$0xff] %v292
        %s436 = scalar_lea.vmem [#allocation1], 16
        %437 = vst [vmem:[%s436] ss:$2 sm:$0xff] %v293
        %v438 = vld.sshfl [vmem:[#allocation1] sm:$0xff pattern:$0x75316420]
        %v439 = vld.sshfl [vmem:[#allocation1 + $0x8] sm:$0xff pattern:$0x75316420]
        %v440 = vld.sshfl [vmem:[#allocation1 + $0x10] sm:$0xff pattern:$0x75316420]
        %441 = vrot.lane.b32.xlu0 %v438, 94
        %v442 = vpop.permute.xlu0 %441
        %443 = vrot.lane.b32.xlu0 %v439, 94
        %v444 = vpop.permute.xlu0 %443
        %445 = vrot.lane.b32.xlu0 %v440, 94
        %v446 = vpop.permute.xlu0 %445
        %vm447 = vcmask 769024
        %v448 = vsel %vm447, %v442, %v444
        %v449 = vsel %vm447, %v444, %v446
        %v450 = vsel %vm240, %v296, %v316
        %v451 = vsel %vm240, %v297, %v317
        %v452 = vsel %vm240, %v335, %v355
        %v453 = vsel %vm240, %v336, %v356
        %v454 = vsel %vm240, %v372, %v392
        %v455 = vsel %vm240, %v373, %v393
        %v456 = vsel %vm240, %v411, %v429
        %v457 = vsel %vm240, %v412, %v430
        %v458 = vld [vmem:[#allocation6] sm:$0xff]
        %v459 = vld [vmem:[#allocation6 + $0x8] sm:$0xff]
        %v460 = vld [vmem:[#allocation6 + $0x10] sm:$0xff]
        %v461 = vld [vmem:[#allocation6 + $0x18] sm:$0xff]
        %vm462 = vcmask 293888
        %v464 = vsel %vm462, %v458, 0
        %v467 = vsel %vm462, %v459, 0
        %v470 = vsel %vm462, %v460, 0
        %v473 = vsel %vm462, %v461, 0
        %v475 = vsel %vm240, %v448, 0
        %v477 = vsel %vm240, %v449, 0
        %479 = vmatpush.msra.mxu0 0.0
        %480 = vmatpush.msra.mxu0 0.0
        %481 = vmatpush.msra.mxu0 0.0
        %482 = vmatpush.msra.mxu0 0.0
        %483 = vmatpush.msra.mxu0 0.0
        %484 = vmatpush.msra.mxu0 0.0
        %485 = vmatpush.msra.mxu0 0.0
        %486 = vmatpush.msra.mxu0 0.0
        %487 = vmatpush.msra.mxu0 0.0
        %488 = vmatpush.msra.mxu0 0.0
        %489 = vmatpush.msra.mxu0 0.0
        %490 = vmatpush.msra.mxu0 %v475
        %491 = vmatpush.msra.mxu0 %v456
        %492 = vmatpush.msra.mxu0 %v454
        %493 = vmatpush.msra.mxu0 %v452
        %494 = vmatpush.msra.mxu0 %v450
        %495 = vmatmul.f32.gmra.mxu0 %v464
        %v496 = vpop.f32.mrf.mxu0
        %v497 = vadd.f32 0.0, %v496
        %498 = vmatmul.f32.gmra.mxu0 %v467
        %v499 = vpop.f32.mrf.mxu0
        %v500 = vadd.f32 0.0, %v499
        %501 = vmatmul.f32.gmra.mxu0 %v470
        %v502 = vpop.f32.mrf.mxu0
        %v503 = vadd.f32 0.0, %v502
        %504 = vmatmul.f32.gmra.mxu0 %v473
        %v505 = vpop.f32.mrf.mxu0
        %v506 = vadd.f32 0.0, %v505
        %507 = vdwg.mxu0
        %508 = vmatpush.msra.mxu0 0.0
        %509 = vmatpush.msra.mxu0 0.0
        %510 = vmatpush.msra.mxu0 0.0
        %511 = vmatpush.msra.mxu0 0.0
        %512 = vmatpush.msra.mxu0 0.0
        %513 = vmatpush.msra.mxu0 0.0
        %514 = vmatpush.msra.mxu0 0.0
        %515 = vmatpush.msra.mxu0 0.0
        %516 = vmatpush.msra.mxu0 0.0
        %517 = vmatpush.msra.mxu0 0.0
        %518 = vmatpush.msra.mxu0 0.0
        %519 = vmatpush.msra.mxu0 %v477
        %520 = vmatpush.msra.mxu0 %v457
        %521 = vmatpush.msra.mxu0 %v455
        %522 = vmatpush.msra.mxu0 %v453
        %523 = vmatpush.msra.mxu0 %v451
        %524 = vmatmul.f32.gmra.mxu0 %v464
        %v525 = vpop.f32.mrf.mxu0
        %v526 = vadd.f32 0.0, %v525
        %527 = vmatmul.f32.gmra.mxu0 %v467
        %v528 = vpop.f32.mrf.mxu0
        %v529 = vadd.f32 0.0, %v528
        %530 = vmatmul.f32.gmra.mxu0 %v470
        %v531 = vpop.f32.mrf.mxu0
        %v532 = vadd.f32 0.0, %v531
        %533 = vmatmul.f32.gmra.mxu0 %v473
        %v534 = vpop.f32.mrf.mxu0
        %v535 = vadd.f32 0.0, %v534
        %536 = vdwg.mxu0
        %537 = vst [vmem:[%s178] sm:$0xff] %v497
        %538 = vst [vmem:[%s178 + $0x8] sm:$0xff] %v526
        %539 = vst [vmem:[%s178 + $0x10] sm:$0xff] %v500
        %540 = vst [vmem:[%s178 + $0x18] sm:$0xff] %v529
        %541 = vst [vmem:[%s178 + $0x20] sm:$0xff] %v503
        %542 = vst [vmem:[%s178 + $0x28] sm:$0xff] %v532
        %543 = vst [vmem:[%s178 + $0x30] sm:$0xff] %v506
        %544 = vst [vmem:[%s178 + $0x38] sm:$0xff] %v535
        %s545 = sand.u32 %s75, 1
        %s546 = scalar_lea.sflag [#allocation5], %s545
        %s547 = sand.u32 %s75, 1
        %s548 = smul.addr %s547, 64
        %s549 = scalar_lea.vmem [#allocation8], %s548
        // Predicated region
        $region37: #{tpu_custom_call.1} parent=27 // pred_check
          %p550 = pneg %p85
        $region38: #{tpu_custom_call.1} parent=27 // pred_check_branch
          %552 = sbr.rel (%p550) target = $region40
        $region39: #{tpu_custom_call.1} parent=27 // pred_region
          %554 = vsyncadd %s546, 0
          %s555 = smul.addr %s20, 8
          %s556 = smul.addr %s555, 8
          %s557 = scalar_lea.hbm %s2, %s556
          %s558 = sshll.u32 %s549, 4
          %s559 = int_to_ptr.vmem [resolvable:$true] %s558
          %s560 = sshll.u32 %s557, 4
          %s561 = int_to_ptr.hbm [resolvable:$true] %s560
          %566 = dma.vmem_to_hbm [thread:$0]  %s559, 1024, %s561, %s546, 256, 256, 16
        $region40: #{tpu_custom_call.1} parent=27 // pred_fallthru
          _
      $region28: #{tpu_custom_call.1} parent=5 // pred_fallthru
        _
      %p567 = scmp.le.s32.totalorder 2, %s15
      // Predicated region
      $region41: #{tpu_custom_call.1} parent=5 // pred_check
        %p568 = pneg %p567
      $region42: #{tpu_custom_call.1} parent=5 // pred_check_branch
        %570 = sbr.rel (%p568) target = $region44
      $region43: #{tpu_custom_call.1} parent=5 // pred_region
        %s571 = ssub.s32 %s15, 2
        // Predicated region
        $region45: #{tpu_custom_call.1} parent=43 // pred_check
          %p572 = pneg %p91
        $region46: #{tpu_custom_call.1} parent=43 // pred_check_branch
          %574 = sbr.rel (%p572) target = $region48
        $region47: #{tpu_custom_call.1} parent=43 // pred_region
          %s575 = sand.u32 %s76, 1
          %s576 = scalar_lea.sflag [#allocation5], %s575
          %s577 = sand.u32 %s76, 1
          %s578 = smul.addr %s577, 64
          %s579 = scalar_lea.vmem [#allocation8], %s578
          %581 = dma.done %s576, 1024
        $region48: #{tpu_custom_call.1} parent=43 // pred_fallthru
          _
      $region44: #{tpu_custom_call.1} parent=5 // pred_fallthru
        _
    $region6: #{tpu_custom_call.1} parent=1 // loop_footer
      %s19 = sadd.s32 1, %s15
    $region7: #{tpu_custom_call.1} parent=1 // loop_footer_branch
      %14 = sbr.rel target = $region3
    $region8: #{tpu_custom_call.1} parent=1 // loop_exit
      _
    %582 = vsyncpa [#allocation4], 1
    %s583 = scalar_lea.sflag [#allocation4], 1
    %584 = vsyncpa %s583, 1
    %585 = vsyncpa [#allocation7], 1
    %586 = vsyncpa [#allocation5], 1
    %s587 = scalar_lea.sflag [#allocation5], 1
    %588 = vsyncpa %s587, 1

</llo_original>
